<compile_context>
chip_gen: v7x
topology: tpu7x:2x2x1
jax: 0.10.0
libtpu: 0.0.40
codegen_flags: <defaults>
</compile_context>

<pallas_src>
import functools

import jax
import jax.numpy as jnp
from jax.experimental import pallas as pl
from jax.experimental.pallas import tpu as pltpu


# ----------------------------- Pallas kernels ------------------------------

def _conv_bn_kernel(p_ref, w_ref, s_ref, b_ref, o_ref, *, relu):
    # p_ref: (tile_m, K) bf16 patches, w_ref: (K, tile_n) bf16,
    # s_ref/b_ref: (1, tile_n) f32, o_ref: (tile_m, tile_n) f32.
    acc = jnp.dot(p_ref[...], w_ref[...], preferred_element_type=jnp.float32)
    y = acc * s_ref[...] + b_ref[...]
    if relu:
        y = jnp.maximum(y, 0.0)
    o_ref[...] = y.astype(o_ref.dtype)


def _conv_bn_res_relu_kernel(p_ref, w_ref, s_ref, b_ref, r_ref, o_ref):
    # Second conv of the left branch fused with residual add + final ReLU.
    acc = jnp.dot(p_ref[...], w_ref[...], preferred_element_type=jnp.float32)
    y = acc * s_ref[...] + b_ref[...] + r_ref[...]
    o_ref[...] = jnp.maximum(y, 0.0).astype(o_ref.dtype)


def _fused_matmul_bn(patches, w_mat, scale, bias, *, tile_m,
                     residual=None, relu=False):
    """Tiled fused (matmul + BN [+ residual] [+ ReLU]) Pallas call.

    patches : (M_pad, K)        bf16   (M_pad % tile_m == 0)
    w_mat   : (K, Cout_pad)     bf16   (Cout_pad % 128 == 0)
    scale   : (1, Cout_pad)     f32
    bias    : (1, Cout_pad)     f32
    residual: (M_pad, Cout_pad) f32 or None
    returns : (M_pad, Cout_pad) f32
    """
    m_pad, k = patches.shape
    cout_pad = w_mat.shape[1]
    tile_n = 128
    grid = (m_pad // tile_m, cout_pad // tile_n)

    in_specs = [
        pl.BlockSpec((tile_m, k), lambda i, j: (i, 0)),      # patches row tile
        pl.BlockSpec((k, tile_n), lambda i, j: (0, j)),      # weight col tile
        pl.BlockSpec((1, tile_n), lambda i, j: (0, j)),      # bn scale
        pl.BlockSpec((1, tile_n), lambda i, j: (0, j)),      # bn bias
    ]
    args = [patches, w_mat, scale, bias]
    if residual is None:
        kernel = functools.partial(_conv_bn_kernel, relu=relu)
    else:
        kernel = _conv_bn_res_relu_kernel
        in_specs.append(pl.BlockSpec((tile_m, tile_n), lambda i, j: (i, j)))
        args.append(residual)

    bytes_accessed = sum(int(a.size) * a.dtype.itemsize for a in args)
    bytes_accessed += m_pad * cout_pad * 4  # f32 output
    cost = pl.CostEstimate(flops=2 * m_pad * k * cout_pad,
                           transcendentals=0,
                           bytes_accessed=bytes_accessed)

    return pl.pallas_call(
        kernel,
        out_shape=jax.ShapeDtypeStruct((m_pad, cout_pad), jnp.float32),
        grid=grid,
        in_specs=in_specs,
        out_specs=pl.BlockSpec((tile_m, tile_n), lambda i, j: (i, j)),
        compiler_params=pltpu.CompilerParams(
            # Both axes are independent output tiles -> shard across the 2
            # TensorCores on v7x; harmless on v5e/v6e.
            dimension_semantics=("parallel", "parallel"),
            # Sized with headroom for v7x's 64 MiB per-TC VMEM.
            vmem_limit_bytes=48 * 1024 * 1024),
        cost_estimate=cost,
    )(*args)


# ------------------------------ JAX-side glue -------------------------------

def _round_up(x, m):
    return (x + m - 1) // m * m


def _im2col_bf16(x_nhwc, ksize, stride, padding, m_pad):
    """im2col patches in bf16, rows zero-padded to m_pad.

    Returns ((m_pad, ksize*ksize*Cin) bf16, Ho, Wo); column order (kh, kw, cin).
    """
    N, H, W, C = x_nhwc.shape
    Ho = (H + 2 * padding - ksize) // stride + 1
    Wo = (W + 2 * padding - ksize) // stride + 1
    xb = x_nhwc.astype(jnp.bfloat16)
    if padding:
        xb = jnp.pad(xb, ((0, 0), (padding, padding), (padding, padding), (0, 0)))
    taps = []
    for kh in range(ksize):
        for kw in range(ksize):
            taps.append(xb[:, kh:kh + stride * Ho:stride,
                            kw:kw + stride * Wo:stride, :])
    patches = jnp.stack(taps, axis=3).reshape(N * Ho * Wo, ksize * ksize * C)
    m = N * Ho * Wo
    if m_pad > m:
        patches = jnp.pad(patches, ((0, m_pad - m), (0, 0)))
    return patches, Ho, Wo


def _weight_matrix_bf16(w_oihw, cout_pad):
    """OIHW conv weight -> (KH*KW*Cin, Cout_pad) bf16, cols zero-padded."""
    cout, cin, kh, kw = w_oihw.shape
    w = jnp.transpose(w_oihw, (2, 3, 1, 0)).reshape(kh * kw * cin, cout)
    if cout_pad > cout:
        w = jnp.pad(w, ((0, 0), (0, cout_pad - cout)))
    return w.astype(jnp.bfloat16)


def _fold_bn_padded(bn, cout_pad, eps=1e-5):
    gamma, beta, mean, var = bn
    scale = gamma / jnp.sqrt(var + eps)
    bias = beta - mean * scale
    pad = cout_pad - scale.shape[0]
    if pad:
        scale = jnp.pad(scale, (0, pad))
        bias = jnp.pad(bias, (0, pad))
    return (scale.reshape(1, cout_pad).astype(jnp.float32),
            bias.reshape(1, cout_pad).astype(jnp.float32))


def _residual_block(x_nhwc, params, stride):
    """One ResidualBlock in NHWC; returns NHWC output."""
    N, H, W, Cin = x_nhwc.shape
    Cout = params["w1"].shape[0]
    Ho = (H + 2 - 3) // stride + 1          # 3x3, pad=1
    Wo = (W + 2 - 3) // stride + 1
    M = N * Ho * Wo

    # Tile sizing: lane-dense 128-wide Cout tiles; row tile 256 (128-aligned,
    # works for v5e's 4x128^2 MXU and fits v7x VMEM with double buffering).
    tile_m = 256 if M >= 256 else _round_up(M, 8)
    m_pad = _round_up(M, tile_m)
    cout_pad = _round_up(Cout, 128)

    # --- left branch, conv1: 3x3 stride=s pad=1, BN, ReLU -------------------
    p1, _, _ = _im2col_bf16(x_nhwc, 3, stride, 1, m_pad)
    w1 = _weight_matrix_bf16(params["w1"], cout_pad)
    s1, b1 = _fold_bn_padded(params["bn1"], cout_pad)
    h1_flat = _fused_matmul_bn(p1, w1, s1, b1, tile_m=tile_m, relu=True)

    # --- right branch (shortcut) --------------------------------------------
    if stride != 1:
        pr, _, _ = _im2col_bf16(x_nhwc, 1, stride, 0, m_pad)
        wr = _weight_matrix_bf16(params["wr"], cout_pad)
        sr, br = _fold_bn_padded(params["bnr"], cout_pad)
        r_flat = _fused_matmul_bn(pr, wr, sr, br, tile_m=tile_m, relu=False)
    else:
        assert Cin == Cout, "identity shortcut requires in_feats == out_feats"
        r_flat = x_nhwc.reshape(M, Cin).astype(jnp.float32)
        r_flat = jnp.pad(r_flat, ((0, m_pad - M), (0, cout_pad - Cin)))

    # --- left branch, conv2: 3x3 stride=1 pad=1, BN; fused + residual + ReLU -
    h1 = h1_flat[:M, :Cout].reshape(N, Ho, Wo, Cout)
    p2, _, _ = _im2col_bf16(h1, 3, 1, 1, m_pad)
    w2 = _weight_matrix_bf16(params["w2"], cout_pad)
    s2, b2 = _fold_bn_padded(params["bn2"], cout_pad)
    out_flat = _fused_matmul_bn(p2, w2, s2, b2, tile_m=tile_m,
                                residual=r_flat)

    return out_flat[:M, :Cout].reshape(N, Ho, Wo, Cout)


def block_group_forward(x_nchw, block_params, first_stride):
    """Pallas implementation of BlockGroup.forward.  x: (N, Cin, H, W)."""
    x = jnp.transpose(x_nchw, (0, 2, 3, 1)).astype(jnp.float32)  # NHWC once
    for idx, params in enumerate(block_params):
        stride = first_stride if idx == 0 else 1
        x = _residual_block(x, params, stride)
    return jnp.transpose(x, (0, 3, 1, 2))                        # NCHW once


# ------------------------------ reference (JAX) ------------------------------

def _reference_block(x, params, stride):
    def conv(x, w, s, p):
        return jax.lax.conv_general_dilated(
            x, w, (s, s), [(p, p), (p, p)],
            dimension_numbers=("NCHW", "OIHW", "NCHW"))

    def bn(y, bn_params):
        g, b, m, v = bn_params
        c = lambda a: a[None, :, None, None]
        return (y - c(m)) / jnp.sqrt(c(v) + 1e-5) * c(g) + c(b)

    left = jax.nn.relu(bn(conv(x, params["w1"], stride, 1), params["bn1"]))
    left = bn(conv(left, params["w2"], 1, 1), params["bn2"])
    if stride != 1:
        right = bn(conv(x, params["wr"], stride, 0), params["bnr"])
    else:
        right = x
    return jax.nn.relu(left + right)


def _reference_group(x, block_params, first_stride):
    for idx, p in enumerate(block_params):
        x = _reference_block(x, p, first_stride if idx == 0 else 1)
    return x


# ----------------------------------- main ------------------------------------

def _make_block_params(key, in_feats, out_feats, downsample):
    ks = jax.random.split(key, 12)

    def bn_params(k0, k1, k2, k3, c):
        gamma = jax.random.uniform(k0, (c,), jnp.float32, 0.5, 1.5)
        beta = 0.1 * jax.random.normal(k1, (c,), jnp.float32)
        mean = 0.1 * jax.random.normal(k2, (c,), jnp.float32)
        var = jax.random.uniform(k3, (c,), jnp.float32, 0.5, 1.5)
        return (gamma, beta, mean, var)

    params = {
        "w1": 0.1 * jax.random.normal(ks[0], (out_feats, in_feats, 3, 3), jnp.float32),
        "bn1": bn_params(ks[1], ks[2], ks[3], ks[4], out_feats),
        "w2": 0.1 * jax.random.normal(ks[5], (out_feats, out_feats, 3, 3), jnp.float32),
        "bn2": bn_params(ks[6], ks[7], ks[8], ks[9], out_feats),
    }
    if downsample:
        params["wr"] = 0.1 * jax.random.normal(
            ks[10], (out_feats, in_feats, 1, 1), jnp.float32)
        params["bnr"] = bn_params(ks[11], ks[2], ks[8], ks[4], out_feats)
    return params


if __name__ == "__main__":
    key = jax.random.PRNGKey(0)
    k_x, k_p = jax.random.split(key)

    # Small shapes consistent with the module: a 2-block group, first block
    # downsamples (stride 2, 4 -> 8 channels), second is an identity block.
    batch, in_feats, out_feats, H, W = 2, 4, 8, 16, 16
    first_stride = 2
    n_blocks = 2

    x = jax.random.normal(k_x, (batch, in_feats, H, W), jnp.float32)
    pkeys = jax.random.split(k_p, n_blocks)
    block_params = [
        _make_block_params(pkeys[0], in_feats, out_feats,
                           downsample=(first_stride != 1))
    ] + [
        _make_block_params(pkeys[i], out_feats, out_feats, downsample=False)
        for i in range(1, n_blocks)
    ]

    out = block_group_forward(x, block_params, first_stride)
    out = jax.block_until_ready(out)

    ref = jax.block_until_ready(_reference_group(x, block_params, first_stride))

    assert out.shape == (batch, out_feats, H // first_stride, W // first_stride), out.shape
    # bf16 MXU inputs (f32 accumulate) vs. the f32 XLA reference -> loose tol.
    err = float(jnp.max(jnp.abs(out - ref)))
    assert jnp.allclose(out, ref, rtol=3e-2, atol=3e-2), err

    print("KERNEL_OK")
</pallas_src>

<mosaic_0001>
module attributes {stable_mosaic.version = 11 : i64} {
  func.func @_conv_bn_kernel(%arg0: i32, %arg1: i32, %arg2: memref<128x36xbf16, #tpu.memory_space<vmem>>, %arg3: memref<36x128xbf16, #tpu.memory_space<vmem>>, %arg4: memref<1x128xf32, #tpu.memory_space<vmem>>, %arg5: memref<1x128xf32, #tpu.memory_space<vmem>>, %arg6: memref<128x128xf32, #tpu.memory_space<vmem>>) attributes {dimension_semantics = [#tpu.dimension_semantics<parallel>, #tpu.dimension_semantics<parallel>], iteration_bounds = array<i64: 1, 1>, scalar_prefetch = 0 : i64, scratch_operands = 0 : i64, tpu.core_type = #tpu.core_type<tc>, window_params = [{transform_indices = @transform_0, window_bounds = array<i64: 128, 36>}, {transform_indices = @transform_1, window_bounds = array<i64: 36, 128>}, {transform_indices = @transform_2, window_bounds = array<i64: 1, 128>}, {transform_indices = @transform_3, window_bounds = array<i64: 1, 128>}, {transform_indices = @transform_4, window_bounds = array<i64: 128, 128>}]} {
    %c0 = arith.constant 0 : index
    %c0_0 = arith.constant 0 : index
    %0 = vector.load %arg2[%c0, %c0_0] : memref<128x36xbf16, #tpu.memory_space<vmem>>, vector<128x36xbf16>
    %c0_1 = arith.constant 0 : index
    %c0_2 = arith.constant 0 : index
    %1 = vector.load %arg3[%c0_1, %c0_2] : memref<36x128xbf16, #tpu.memory_space<vmem>>, vector<36x128xbf16>
    %cst = arith.constant dense<0.000000e+00> : vector<128x128xf32>
    %2 = tpu.matmul %0, %1, %cst {dimension_numbers = #tpu.dot_dimension_numbers<[1], [0], [0], [1], [0, 0, 1, 1], [], []>} : vector<128x36xbf16>, vector<36x128xbf16>, vector<128x128xf32> -> vector<128x128xf32>
    %c0_3 = arith.constant 0 : index
    %c0_4 = arith.constant 0 : index
    %3 = vector.load %arg4[%c0_3, %c0_4] : memref<1x128xf32, #tpu.memory_space<vmem>>, vector<1x128xf32>
    %4 = vector.broadcast %3 : vector<1x128xf32> to vector<128x128xf32>
    %5 = arith.mulf %2, %4 : vector<128x128xf32>
    %c0_5 = arith.constant 0 : index
    %c0_6 = arith.constant 0 : index
    %6 = vector.load %arg5[%c0_5, %c0_6] : memref<1x128xf32, #tpu.memory_space<vmem>>, vector<1x128xf32>
    %7 = vector.broadcast %6 : vector<1x128xf32> to vector<128x128xf32>
    %8 = arith.addf %5, %7 : vector<128x128xf32>
    %cst_7 = arith.constant 0.000000e+00 : f32
    %9 = vector.broadcast %cst_7 : f32 to vector<128x128xf32>
    %10 = arith.maximumf %8, %9 : vector<128x128xf32>
    %c0_8 = arith.constant 0 : index
    %c0_9 = arith.constant 0 : index
    %11 = vector.load %arg6[%c0_8, %c0_9] : memref<128x128xf32, #tpu.memory_space<vmem>>, vector<128x128xf32>
    tpu.vector_store %arg6[%c0_8, %c0_9], %10 {strides = array<i32>} : memref<128x128xf32, #tpu.memory_space<vmem>>, vector<128x128xf32>,
    return
  }
  func.func @transform_0(%arg0: i32, %arg1: i32) -> (i32, i32) {
    %c0_i32 = arith.constant 0 : i32
    %c0_i32_0 = arith.constant 0 : i32
    return %arg0, %c0_i32 : i32, i32
  }
  func.func @transform_1(%arg0: i32, %arg1: i32) -> (i32, i32) {
    %c0_i32 = arith.constant 0 : i32
    %c0_i32_0 = arith.constant 0 : i32
    return %c0_i32, %arg1 : i32, i32
  }
  func.func @transform_2(%arg0: i32, %arg1: i32) -> (i32, i32) {
    %c0_i32 = arith.constant 0 : i32
    %c0_i32_0 = arith.constant 0 : i32
    return %c0_i32, %arg1 : i32, i32
  }
  func.func @transform_3(%arg0: i32, %arg1: i32) -> (i32, i32) {
    %c0_i32 = arith.constant 0 : i32
    %c0_i32_0 = arith.constant 0 : i32
    return %c0_i32, %arg1 : i32, i32
  }
  func.func @transform_4(%arg0: i32, %arg1: i32) -> (i32, i32) {
    %c0_i32 = arith.constant 0 : i32
    return %arg0, %arg1 : i32, i32
  }
}

</mosaic_0001>

<llo_original>
// kernel: tpu_custom_call.1
$region0: #{tpu_custom_call.1}
  #allocation0 [shape = 'u32[]', space=smem, size = 0x4, offset = 0x4, fixed_abs, tag = 'smem constant byte address 0x4 - core index']
  #allocation1 [shape = 'u32[144,128]{1,0:T(1,128)}', space=vmem, size = 0x12000, scoped, tag = 'internal scratch']
  %s0 = inlined_call_operand.vmem [shape: bf16[128,36], index: 0, kind: input, shape index: {}]
  %s1 = inlined_call_operand.vmem [shape: bf16[36,128], index: 1, kind: input, shape index: {}]
  %s2 = inlined_call_operand.vmem [shape: f32[1,128], index: 2, kind: input, shape index: {}]
  %s3 = inlined_call_operand.vmem [shape: f32[1,128], index: 3, kind: input, shape index: {}]
  %s4 = inlined_call_operand.hbm [shape: f32[128,128], index: 4, kind: output, shape index: {}]
  %s5 = sld [smem:[#allocation0]]
  $region26: #{tpu_custom_call.1} parent=0
    _
  %s7 = ssub.s32 1, %s5
  %s8 = scalar_select 0, %s7, %s5
  $region1: #{tpu_custom_call.1} parent=0
    #allocation2 [shape = 'u8[65536]{0}', space=vmem, size = 0x10000, scoped, tag = 'output window, operand 0, single buffered']
    #allocation3 [shape = 's32[1]{0}', space=sflag, size = 0x4, scoped, tag = 'scoped memory for tpu_custom_call.1']
    %9 = vsyncpa [#allocation3], 0
    // Predicated region
    $region2: #{tpu_custom_call.1} parent=1 // pred_check
      _
    $region3: #{tpu_custom_call.1} parent=1 // pred_check_branch
      %11 = sbr.rel (0) target = $region5
    $region4: #{tpu_custom_call.1} parent=1 // pred_region
      _
    $region5: #{tpu_custom_call.1} parent=1 // pred_fallthru
      _
    // Predicated region
    $region6: #{tpu_custom_call.1} parent=1 // pred_check
      _
    $region7: #{tpu_custom_call.1} parent=1 // pred_check_branch
      %13 = sbr.rel (0) target = $region9
    $region8: #{tpu_custom_call.1} parent=1 // pred_region
      _
    $region9: #{tpu_custom_call.1} parent=1 // pred_fallthru
      _
    // Predicated region
    $region10: #{tpu_custom_call.1} parent=1 // pred_check
      _
    $region11: #{tpu_custom_call.1} parent=1 // pred_check_branch
      %15 = sbr.rel (0) target = $region13
    $region12: #{tpu_custom_call.1} parent=1 // pred_region
      _
    $region13: #{tpu_custom_call.1} parent=1 // pred_fallthru
      _
    // Predicated region
    $region14: #{tpu_custom_call.1} parent=1 // pred_check
      _
    $region15: #{tpu_custom_call.1} parent=1 // pred_check_branch
      %17 = sbr.rel (0) target = $region17
    $region16: #{tpu_custom_call.1} parent=1 // pred_region
      _
    $region17: #{tpu_custom_call.1} parent=1 // pred_fallthru
      _
    %v19 = vld [vmem:[%s0] sm:$0xf]
    %v20 = vld [vmem:[%s0 + $0x4] sm:$0xf]
    %v21 = vld [vmem:[%s0 + $0x8] sm:$0xf]
    %v22 = vld [vmem:[%s0 + $0xc] sm:$0xf]
    %v23 = vld [vmem:[%s0 + $0x10] sm:$0xf]
    %v24 = vld [vmem:[%s0 + $0x14] sm:$0xf]
    %v25 = vld [vmem:[%s0 + $0x18] sm:$0xf]
    %v26 = vld [vmem:[%s0 + $0x1c] sm:$0xf]
    %v27 = vld [vmem:[%s0 + $0x20] sm:$0xf]
    %v28 = vld [vmem:[%s0 + $0x24] sm:$0xf]
    %v29 = vld [vmem:[%s0 + $0x28] sm:$0xf]
    %v30 = vld [vmem:[%s0 + $0x2c] sm:$0xf]
    %v31 = vld [vmem:[%s0 + $0x30] sm:$0xf]
    %v32 = vld [vmem:[%s0 + $0x34] sm:$0xf]
    %v33 = vld [vmem:[%s0 + $0x38] sm:$0xf]
    %v34 = vld [vmem:[%s0 + $0x3c] sm:$0xf]
    %v35 = vld [vmem:[%s1] sm:$0xf]
    %v36 = vld [vmem:[%s1 + $0x4] sm:$0xf]
    %v37 = vld [vmem:[%s1 + $0x8] sm:$0xf]
    %v38 = vld [vmem:[%s1 + $0xc] sm:$0xf]
    %v39 = vld [vmem:[%s1 + $0x10] sm:$0x3]
    %v56 = vunpack.c.l.b16 %v19
    %v57 = vunpack.c.l.b16 %v20
    %v58 = vunpack.c.l.b16 %v21
    %v59 = vunpack.c.l.b16 %v22
    %v60 = vunpack.c.l.b16 %v23
    %v61 = vunpack.c.l.b16 %v24
    %v62 = vunpack.c.l.b16 %v25
    %v63 = vunpack.c.l.b16 %v26
    %v64 = vunpack.c.l.b16 %v27
    %v65 = vunpack.c.l.b16 %v28
    %v66 = vunpack.c.l.b16 %v29
    %v67 = vunpack.c.l.b16 %v30
    %v68 = vunpack.c.l.b16 %v31
    %v69 = vunpack.c.l.b16 %v32
    %v70 = vunpack.c.l.b16 %v33
    %v71 = vunpack.c.l.b16 %v34
    %v72 = vpack.c.b16 %v57, %v56
    %v73 = vpack.c.b16 %v59, %v58
    %v74 = vpack.c.b16 %v61, %v60
    %v75 = vpack.c.b16 %v63, %v62
    %v76 = vpack.c.b16 %v65, %v64
    %v77 = vpack.c.b16 %v67, %v66
    %v78 = vpack.c.b16 %v69, %v68
    %v79 = vpack.c.b16 %v71, %v70
    %v85 = vunpack.c.l.b16 %v35
    %v86 = vunpack.c.l.b16 %v36
    %v87 = vunpack.c.l.b16 %v37
    %v88 = vunpack.c.l.b16 %v38
    %v89 = vunpack.c.l.b16 %v39
    %v90 = vpack.c.b16 %v86, %v85
    %v91 = vpack.c.b16 %v88, %v87
    %v92 = vpack.c.b16 %v89, %v89
    %vm95 = vcmask 293888
    %v97 = vsel %vm95, %v72, 0
    %v100 = vsel %vm95, %v73, 0
    %v103 = vsel %vm95, %v74, 0
    %v106 = vsel %vm95, %v75, 0
    %v109 = vsel %vm95, %v76, 0
    %v112 = vsel %vm95, %v77, 0
    %v115 = vsel %vm95, %v78, 0
    %v118 = vsel %vm95, %v79, 0
    %vm120 = vcmask 1041408
    %v122 = vsel %vm120, %v92, 0
    %124 = vmatprep.subr.bf16.mxu0 0
    %125 = vmatpush1.bf16.msra.mxu0 %v90
    %126 = vmatprep.subr.bf16.mxu0 0
    %127 = vmatpush1.bf16.msra.mxu0 %v91
    %128 = vmatprep.subr.bf16.mxu0 0
    %129 = vmatpush1.bf16.msra.mxu0 %v122
    %130 = vmatprep.subr.bf16.mxu0 0
    %131 = vmatpush1.bf16.msra.mxu0 0
    %132 = vmatprep.subr.bf16.mxu0 0
    %133 = vmatpush1.bf16.msra.mxu0 0
    %134 = vmatprep.subr.bf16.mxu0 0
    %135 = vmatpush1.bf16.msra.mxu0 0
    %136 = vmatprep.subr.bf16.mxu0 0
    %137 = vmatpush1.bf16.msra.mxu0 0
    %138 = vmatprep.subr.bf16.mxu0 0
    %139 = vmatpush1.bf16.msra.mxu0 0
    %140 = vmatprep.subr.bf16.mxu0 0
    %141 = vmatpush1.bf16.msra.mxu0 0
    %142 = vmatprep.subr.bf16.mxu0 0
    %143 = vmatpush1.bf16.msra.mxu0 0
    %144 = vmatprep.subr.bf16.mxu0 0
    %145 = vmatpush1.bf16.msra.mxu0 0
    %146 = vmatprep.subr.bf16.mxu0 0
    %147 = vmatpush1.bf16.msra.mxu0 0
    %148 = vmatprep.subr.bf16.mxu0 0
    %149 = vmatpush1.bf16.msra.mxu0 0
    %150 = vmatprep.subr.bf16.mxu0 0
    %151 = vmatpush1.bf16.msra.mxu0 0
    %152 = vmatprep.subr.bf16.mxu0 0
    %153 = vmatpush1.bf16.msra.mxu0 0
    %154 = vmatprep.subr.bf16.mxu0 0
    %155 = vmatpush1.bf16.msra.mxu0 0
    %156 = vmatprep.mubr.bf16.mxu0 0
    %157 = vmatmul.mubr.bf16.gmra.mrb[0].mxu0 %v97
    %v158 = vpop.f32.mrb[0].mxu0
    %v159 = vadd.f32 0.0, %v158
    %v160 = vpop.f32.mrb[0].mxu0
    %v161 = vpop.f32.mrb[0].mxu0
    %v162 = vadd.f32 0.0, %v161
    %v163 = vpop.f32.mrb[0].mxu0
    %164 = vmatprep.mubr.bf16.mxu0 0
    %165 = vmatmul.mubr.bf16.gmra.mrb[0].mxu0 %v100
    %v166 = vpop.f32.mrb[0].mxu0
    %v167 = vadd.f32 0.0, %v166
    %v168 = vpop.f32.mrb[0].mxu0
    %v169 = vpop.f32.mrb[0].mxu0
    %v170 = vadd.f32 0.0, %v169
    %v171 = vpop.f32.mrb[0].mxu0
    %172 = vmatprep.mubr.bf16.mxu0 0
    %173 = vmatmul.mubr.bf16.gmra.mrb[0].mxu0 %v103
    %v174 = vpop.f32.mrb[0].mxu0
    %v175 = vadd.f32 0.0, %v174
    %v176 = vpop.f32.mrb[0].mxu0
    %v177 = vpop.f32.mrb[0].mxu0
    %v178 = vadd.f32 0.0, %v177
    %v179 = vpop.f32.mrb[0].mxu0
    %180 = vmatprep.mubr.bf16.mxu0 0
    %181 = vmatmul.mubr.bf16.gmra.mrb[0].mxu0 %v106
    %v182 = vpop.f32.mrb[0].mxu0
    %v183 = vadd.f32 0.0, %v182
    %v184 = vpop.f32.mrb[0].mxu0
    %v185 = vpop.f32.mrb[0].mxu0
    %v186 = vadd.f32 0.0, %v185
    %v187 = vpop.f32.mrb[0].mxu0
    %188 = vmatprep.mubr.bf16.mxu0 0
    %189 = vmatmul.mubr.bf16.gmra.mrb[0].mxu0 %v109
    %v190 = vpop.f32.mrb[0].mxu0
    %v191 = vadd.f32 0.0, %v190
    %v192 = vpop.f32.mrb[0].mxu0
    %v193 = vpop.f32.mrb[0].mxu0
    %v194 = vadd.f32 0.0, %v193
    %v195 = vpop.f32.mrb[0].mxu0
    %196 = vmatprep.mubr.bf16.mxu0 0
    %197 = vmatmul.mubr.bf16.gmra.mrb[0].mxu0 %v112
    %v198 = vpop.f32.mrb[0].mxu0
    %v199 = vadd.f32 0.0, %v198
    %v200 = vpop.f32.mrb[0].mxu0
    %v201 = vpop.f32.mrb[0].mxu0
    %v202 = vadd.f32 0.0, %v201
    %v203 = vpop.f32.mrb[0].mxu0
    %204 = vmatprep.mubr.bf16.mxu0 0
    %205 = vmatmul.mubr.bf16.gmra.mrb[0].mxu0 %v115
    %v206 = vpop.f32.mrb[0].mxu0
    %v207 = vadd.f32 0.0, %v206
    %v208 = vpop.f32.mrb[0].mxu0
    %v209 = vpop.f32.mrb[0].mxu0
    %v210 = vadd.f32 0.0, %v209
    %v211 = vpop.f32.mrb[0].mxu0
    %212 = vmatprep.mubr.bf16.mxu0 0
    %213 = vmatmul.mubr.bf16.gmra.mrb[0].mxu0 %v118
    %v214 = vpop.f32.mrb[0].mxu0
    %v215 = vadd.f32 0.0, %v214
    %v216 = vpop.f32.mrb[0].mxu0
    %v217 = vpop.f32.mrb[0].mxu0
    %v218 = vadd.f32 0.0, %v217
    %v219 = vpop.f32.mrb[0].mxu0
    %220 = vdwg.mxu0
    %v221 = vld [vmem:[%s2] sm:$0x1]
    %v223 = vlaneseq
    %v224 = vshrl.u32 %v223, 7
    %v225 = vsub.s32 0, %v224
    %v226 = vrot.slane %v221, %v225
    %v228 = vmul.f32 %v159, %v226
    %v229 = vmul.f32 %v162, %v226
    %v230 = vmul.f32 %v167, %v226
    %v231 = vmul.f32 %v170, %v226
    %v232 = vmul.f32 %v175, %v226
    %v233 = vmul.f32 %v178, %v226
    %v234 = vmul.f32 %v183, %v226
    %v235 = vmul.f32 %v186, %v226
    %v236 = vmul.f32 %v191, %v226
    %v237 = vmul.f32 %v194, %v226
    %v238 = vmul.f32 %v199, %v226
    %v239 = vmul.f32 %v202, %v226
    %v240 = vmul.f32 %v207, %v226
    %v241 = vmul.f32 %v210, %v226
    %v242 = vmul.f32 %v215, %v226
    %v243 = vmul.f32 %v218, %v226
    %v244 = vld [vmem:[%s3] sm:$0x1]
    %v246 = vlaneseq
    %v247 = vshrl.u32 %v246, 7
    %v248 = vsub.s32 0, %v247
    %v249 = vrot.slane %v244, %v248
    %v251 = vadd.f32 %v228, %v249
    %v252 = vadd.f32 %v229, %v249
    %v253 = vadd.f32 %v230, %v249
    %v254 = vadd.f32 %v231, %v249
    %v255 = vadd.f32 %v232, %v249
    %v256 = vadd.f32 %v233, %v249
    %v257 = vadd.f32 %v234, %v249
    %v258 = vadd.f32 %v235, %v249
    %v259 = vadd.f32 %v236, %v249
    %v260 = vadd.f32 %v237, %v249
    %v261 = vadd.f32 %v238, %v249
    %v262 = vadd.f32 %v239, %v249
    %v263 = vadd.f32 %v240, %v249
    %v264 = vadd.f32 %v241, %v249
    %v265 = vadd.f32 %v242, %v249
    %v266 = vadd.f32 %v243, %v249
    %v267 = vmax.f32 %v251, 0.0
    %v268 = vmax.f32 %v252, 0.0
    %v269 = vmax.f32 %v253, 0.0
    %v270 = vmax.f32 %v254, 0.0
    %v271 = vmax.f32 %v255, 0.0
    %v272 = vmax.f32 %v256, 0.0
    %v273 = vmax.f32 %v257, 0.0
    %v274 = vmax.f32 %v258, 0.0
    %v275 = vmax.f32 %v259, 0.0
    %v276 = vmax.f32 %v260, 0.0
    %v277 = vmax.f32 %v261, 0.0
    %v278 = vmax.f32 %v262, 0.0
    %v279 = vmax.f32 %v263, 0.0
    %v280 = vmax.f32 %v264, 0.0
    %v281 = vmax.f32 %v265, 0.0
    %v282 = vmax.f32 %v266, 0.0
    %283 = vst [vmem:[#allocation2] sm:$0xff] %v267
    %284 = vst [vmem:[#allocation2 + $0x8] sm:$0xff] %v268
    %285 = vst [vmem:[#allocation2 + $0x10] sm:$0xff] %v269
    %286 = vst [vmem:[#allocation2 + $0x18] sm:$0xff] %v270
    %287 = vst [vmem:[#allocation2 + $0x20] sm:$0xff] %v271
    %288 = vst [vmem:[#allocation2 + $0x28] sm:$0xff] %v272
    %289 = vst [vmem:[#allocation2 + $0x30] sm:$0xff] %v273
    %290 = vst [vmem:[#allocation2 + $0x38] sm:$0xff] %v274
    %291 = vst [vmem:[#allocation2 + $0x40] sm:$0xff] %v275
    %292 = vst [vmem:[#allocation2 + $0x48] sm:$0xff] %v276
    %293 = vst [vmem:[#allocation2 + $0x50] sm:$0xff] %v277
    %294 = vst [vmem:[#allocation2 + $0x58] sm:$0xff] %v278
    %295 = vst [vmem:[#allocation2 + $0x60] sm:$0xff] %v279
    %296 = vst [vmem:[#allocation2 + $0x68] sm:$0xff] %v280
    %297 = vst [vmem:[#allocation2 + $0x70] sm:$0xff] %v281
    %298 = vst [vmem:[#allocation2 + $0x78] sm:$0xff] %v282
    // Predicated region
    $region18: #{tpu_custom_call.1} parent=1 // pred_check
      _
    $region19: #{tpu_custom_call.1} parent=1 // pred_check_branch
      %300 = sbr.rel (0) target = $region21
    $region20: #{tpu_custom_call.1} parent=1 // pred_region
      %s302 = ssub.s32 2048, 2048
      %303 = vsyncadd [#allocation3], %s302
      %s304 = sshll.u32 [#allocation2], 4
      %s305 = int_to_ptr.vmem [resolvable:$true] %s304
      %310 = dma.vmem_to_hbm [thread:$0]  %s305, 2048, %s4, [#allocation3], 128, 128, 8
    $region21: #{tpu_custom_call.1} parent=1 // pred_fallthru
      _
    // Predicated region
    $region22: #{tpu_custom_call.1} parent=1 // pred_check
      _
    $region23: #{tpu_custom_call.1} parent=1 // pred_check_branch
      %312 = sbr.rel (0) target = $region25
    $region24: #{tpu_custom_call.1} parent=1 // pred_region
      %313 = dma.done [#allocation3], 2048
    $region25: #{tpu_custom_call.1} parent=1 // pred_fallthru
      _
    %314 = vsyncpa [#allocation3], 1

</llo_original>
